<compile_context>
chip_gen: v7x
topology: tpu7x:2x2x1
jax: 0.10.0
libtpu: 0.0.40
codegen_flags: <defaults>
</compile_context>

<pallas_src>
import functools

import jax
import jax.numpy as jnp
from jax.experimental import pallas as pl
from jax.experimental.pallas import tpu as pltpu


# ----------------------------------------------------------------------------
# Generation-aware tile / VMEM budget selection
# ----------------------------------------------------------------------------
def _tpu_vmem_capacity_bytes():
    try:
        return int(pltpu.get_tpu_info().vmem_capacity_bytes)
    except Exception:
        return 64 * 1024 * 1024  # conservative (v7x-like) fallback


_VMEM_CAP = _tpu_vmem_capacity_bytes()
_LARGE_VMEM = _VMEM_CAP >= 100 * 1024 * 1024          # v5e / v6e (128 MiB)
_T_HW_CONV = 512 if _LARGE_VMEM else 256               # spatial rows per conv tile
_T_CO_MAX = 256                                        # MXU-aligned Cout tile
_T_HW_POOL = 512 if _LARGE_VMEM else 256               # spatial rows per pool tile
_VMEM_LIMIT = min(int(_VMEM_CAP * 3 // 4), 112 * 1024 * 1024)


def _round_up(x, m):
    return ((x + m - 1) // m) * m


# ----------------------------------------------------------------------------
# Pallas kernels
# ----------------------------------------------------------------------------
def _conv_relu_kernel(p_ref, w_ref, b_ref, o_ref):
    """One (HW-tile x Cout-tile) of conv + bias + ReLU.

    p_ref: (1, T_HW, K*Cin_p)  bf16 im2col patch tile (taps folded into contraction)
    w_ref: (K*Cin_p, T_CO)     bf16 weight tile (VMEM-resident across HW axis)
    b_ref: (1, T_CO)           f32 bias tile
    o_ref: (1, T_HW, T_CO)     f32 output tile
    """
    acc = jnp.dot(p_ref[0], w_ref[...], preferred_element_type=jnp.float32)
    acc = acc + b_ref[...]
    o_ref[0] = jnp.maximum(acc, 0.0).astype(o_ref.dtype)


def _pool_kernel(p_ref, o_ref, *, mode):
    """Max / average pool over the 9-tap axis for one (batch, HW-tile).

    p_ref: (1, K, T_HW, C), o_ref: (1, T_HW, C)
    """
    K = p_ref.shape[1]
    r = p_ref[0, 0]
    for t in range(1, K):
        tap = p_ref[0, t]
        if mode == "max":
            r = jnp.maximum(r, tap)
        else:
            r = r + tap
    if mode == "avg":
        r = r * (1.0 / K)  # count_include_pad=True semantics
    o_ref[0] = r.astype(o_ref.dtype)


# ----------------------------------------------------------------------------
# Wrappers (plain-JAX glue + pallas_call)
# ----------------------------------------------------------------------------
def _extract_taps(x_nhwc, ksize, stride, pad, dilation, pad_value):
    """Return list of K=ksize*ksize taps, each (N, Ho*Wo, C), plus (Ho, Wo)."""
    N, H, W, C = x_nhwc.shape
    xp = jnp.pad(
        x_nhwc,
        ((0, 0), (pad, pad), (pad, pad), (0, 0)),
        constant_values=pad_value,
    )
    Hp, Wp = H + 2 * pad, W + 2 * pad
    eff = dilation * (ksize - 1) + 1
    Ho = (Hp - eff) // stride + 1
    Wo = (Wp - eff) // stride + 1
    taps = []
    for ky in range(ksize):
        for kx in range(ksize):
            y0 = ky * dilation
            x0 = kx * dilation
            t = xp[
                :,
                y0 : y0 + (Ho - 1) * stride + 1 : stride,
                x0 : x0 + (Wo - 1) * stride + 1 : stride,
                :,
            ]
            taps.append(t.reshape(N, Ho * Wo, C))
    return taps, Ho, Wo


def conv2d_relu(x_nhwc, w, b, *, stride=1, padding=1, dilation=1):
    """Conv2d (PyTorch weight layout (Cout, Cin, kh, kw)) + ReLU, NHWC in/out."""
    Cout, Cin, kh, kw = w.shape
    K = kh * kw
    taps, Ho, Wo = _extract_taps(x_nhwc, kh, stride, padding, dilation, 0.0)
    N = x_nhwc.shape[0]
    HW = Ho * Wo
    KC = K * Cin

    # --- tile geometry -------------------------------------------------------
    KC_p = _round_up(KC, 128)            # contraction dim (lane-aligned)
    Cout_p = _round_up(Cout, 128)        # lane-dense output channels
    t_co = min(_T_CO_MAX, Cout_p)
    t_hw = min(_T_HW_CONV, _round_up(HW, 8))
    HW_p = _round_up(HW, t_hw)

    # --- operand prep (bf16 matmul operands, f32 bias/accumulation) ----------
    # Patches: taps folded into the contraction axis -> (N, HW, K*Cin).
    patches = jnp.concatenate(taps, axis=-1)
    patches = jnp.pad(patches, ((0, 0), (0, HW_p - HW), (0, KC_p - KC)))
    patches = patches.astype(jnp.bfloat16)

    # Weights: (Cout, Cin, kh, kw) -> (kh, kw, Cin, Cout) -> (K*Cin, Cout),
    # tap order matching the patch concatenation above.
    w_flat = jnp.transpose(w, (2, 3, 1, 0)).reshape(KC, Cout)
    w_flat = jnp.pad(w_flat, ((0, KC_p - KC), (0, Cout_p - Cout)))
    w_flat = w_flat.astype(jnp.bfloat16)
    b2 = jnp.pad(b, (0, Cout_p - Cout)).reshape(1, Cout_p).astype(jnp.float32)

    # Grid: Cout tiles outer, HW tiles inner so the weight/bias tile (index map
    # independent of the HW axis) stays resident while HW streams.
    grid = (N, Cout_p // t_co, HW_p // t_hw)

    out = pl.pallas_call(
        _conv_relu_kernel,
        out_shape=jax.ShapeDtypeStruct((N, HW_p, Cout_p), jnp.float32),
        grid=grid,
        in_specs=[
            pl.BlockSpec((1, t_hw, KC_p), lambda n, c, h: (n, h, 0)),
            pl.BlockSpec((KC_p, t_co), lambda n, c, h: (0, c)),
            pl.BlockSpec((1, t_co), lambda n, c, h: (0, c)),
        ],
        out_specs=pl.BlockSpec((1, t_hw, t_co), lambda n, c, h: (n, h, c)),
        compiler_params=pltpu.CompilerParams(
            dimension_semantics=("parallel", "parallel", "parallel"),
            vmem_limit_bytes=_VMEM_LIMIT,
        ),
    )(patches, w_flat, b2)

    out = out[:, :HW, :Cout]
    return out.reshape(N, Ho, Wo, Cout)


def pool2d(x_nhwc, *, kind, ksize=3, stride=2, padding=1):
    """MaxPool2d / AvgPool2d (count_include_pad=True), NHWC in/out, tiled over HW."""
    N, H, W, C = x_nhwc.shape
    pad_val = float("-inf") if kind == "max" else 0.0
    taps, Ho, Wo = _extract_taps(x_nhwc, ksize, stride, padding, 1, pad_val)
    K = ksize * ksize
    HW = Ho * Wo

    t_hw = min(_T_HW_POOL, _round_up(HW, 8))
    HW_p = _round_up(HW, t_hw)

    patches = jnp.stack(taps, axis=1)  # (N, K, HW, C)
    if HW_p != HW:
        # tail rows are discarded by the wrapper slice, so zero padding is fine
        patches = jnp.pad(patches, ((0, 0), (0, 0), (0, HW_p - HW), (0, 0)))

    out = pl.pallas_call(
        functools.partial(_pool_kernel, mode=kind),
        out_shape=jax.ShapeDtypeStruct((N, HW_p, C), x_nhwc.dtype),
        grid=(N, HW_p // t_hw),
        in_specs=[pl.BlockSpec((1, K, t_hw, C), lambda n, h: (n, 0, h, 0))],
        out_specs=pl.BlockSpec((1, t_hw, C), lambda n, h: (n, h, 0)),
        compiler_params=pltpu.CompilerParams(
            dimension_semantics=("parallel", "parallel"),
            vmem_limit_bytes=_VMEM_LIMIT,
        ),
    )(patches)

    out = out[:, :HW, :]
    return out.reshape(N, Ho, Wo, C)


# ----------------------------------------------------------------------------
# VGG_layer parameters and forward
# ----------------------------------------------------------------------------
_CONV_CFG = [
    # name,     cin, cout, dilation (padding == dilation for all layers here)
    ("conv1_1", 3, 64, 1),
    ("conv1_2", 64, 64, 1),
    ("conv2_1", 64, 128, 1),
    ("conv2_2", 128, 128, 1),
    ("conv3_1", 128, 256, 1),
    ("conv3_2", 256, 256, 1),
    ("conv3_3", 256, 256, 1),
    ("conv4_1", 256, 512, 1),
    ("conv4_2", 512, 512, 1),
    ("conv4_3", 512, 512, 1),
    ("conv5_1", 512, 512, 2),
    ("conv5_2", 512, 512, 2),
    ("conv5_3", 512, 512, 2),
]


def init_params(key):
    params = {}
    for i, (name, cin, cout, dil) in enumerate(_CONV_CFG):
        k_w, k_b = jax.random.split(jax.random.fold_in(key, i))
        std = (2.0 / (cin * 9)) ** 0.5  # He-style fan-in scaling (deterministic)
        params[name] = {
            "w": jax.random.normal(k_w, (cout, cin, 3, 3), jnp.float32) * std,
            "b": jax.random.normal(k_b, (cout,), jnp.float32) * 0.01,
            "dilation": dil,
            "padding": dil,
        }
    return params


def vgg_layer_forward(params, x_nchw, depth=None):
    """VGG_layer.forward with batch_norm=False, depthconv=False. Returns (x, depth)."""
    x = jnp.transpose(x_nchw, (0, 2, 3, 1))  # NCHW -> NHWC

    def conv(name, h):
        p = params[name]
        return conv2d_relu(
            h, p["w"], p["b"], stride=1, padding=p["padding"], dilation=p["dilation"]
        )

    x = conv("conv1_1", x)
    x = conv("conv1_2", x)
    x = pool2d(x, kind="max", ksize=3, stride=2, padding=1)
    x = conv("conv2_1", x)
    x = conv("conv2_2", x)
    x = pool2d(x, kind="max", ksize=3, stride=2, padding=1)
    x = conv("conv3_1", x)
    x = conv("conv3_2", x)
    x = conv("conv3_3", x)
    x = pool2d(x, kind="max", ksize=3, stride=2, padding=1)
    x = conv("conv4_1", x)
    x = conv("conv4_2", x)
    x = conv("conv4_3", x)
    x = pool2d(x, kind="max", ksize=3, stride=1, padding=1)
    x = conv("conv5_1", x)
    x = conv("conv5_2", x)
    x = conv("conv5_3", x)
    x = pool2d(x, kind="max", ksize=3, stride=1, padding=1)
    x = pool2d(x, kind="avg", ksize=3, stride=1, padding=1)  # pool5a

    x = jnp.transpose(x, (0, 3, 1, 2))  # NHWC -> NCHW (match PyTorch output)
    return x, depth


if __name__ == "__main__":
    key = jax.random.PRNGKey(0)
    params = init_params(jax.random.fold_in(key, 100))
    # PyTorch input is NCHW with 3 channels.
    x = jax.random.normal(jax.random.fold_in(key, 200), (2, 3, 16, 16), jnp.float32)

    out, depth_out = vgg_layer_forward(params, x)
    out = jax.block_until_ready(out)

    assert out.shape == (2, 512, 2, 2), out.shape
    assert depth_out is None
    assert bool(jnp.all(jnp.isfinite(out)))
    print("KERNEL_OK")
</pallas_src>

<mosaic_0001>
module attributes {stable_mosaic.version = 11 : i64} {
  func.func @_conv_relu_kernel(%arg0: i32, %arg1: i32, %arg2: i32, %arg3: memref<1x256x128xbf16, #tpu.memory_space<vmem>>, %arg4: memref<128x128xbf16, #tpu.memory_space<vmem>>, %arg5: memref<1x128xf32, #tpu.memory_space<vmem>>, %arg6: memref<1x256x128xf32, #tpu.memory_space<vmem>>) attributes {dimension_semantics = [#tpu.dimension_semantics<parallel>, #tpu.dimension_semantics<parallel>, #tpu.dimension_semantics<parallel>], iteration_bounds = array<i64: 2, 1, 1>, scalar_prefetch = 0 : i64, scratch_operands = 0 : i64, tpu.core_type = #tpu.core_type<tc>, window_params = [{transform_indices = @transform_0, window_bounds = array<i64: 1, 256, 128>}, {transform_indices = @transform_1, window_bounds = array<i64: 128, 128>}, {transform_indices = @transform_2, window_bounds = array<i64: 1, 128>}, {transform_indices = @transform_3, window_bounds = array<i64: 1, 256, 128>}]} {
    %c0 = arith.constant 0 : index
    %c0_0 = arith.constant 0 : index
    %c0_1 = arith.constant 0 : index
    %0 = vector.load %arg3[%c0, %c0_0, %c0_1] : memref<1x256x128xbf16, #tpu.memory_space<vmem>>, vector<1x256x128xbf16>
    %1 = vector.shape_cast %0 : vector<1x256x128xbf16> to vector<256x128xbf16>
    %c0_2 = arith.constant 0 : index
    %c0_3 = arith.constant 0 : index
    %2 = vector.load %arg4[%c0_2, %c0_3] : memref<128x128xbf16, #tpu.memory_space<vmem>>, vector<128x128xbf16>
    %cst = arith.constant dense<0.000000e+00> : vector<256x128xf32>
    %3 = tpu.matmul %1, %2, %cst {dimension_numbers = #tpu.dot_dimension_numbers<[1], [0], [0], [1], [0, 0, 1, 1], [], []>} : vector<256x128xbf16>, vector<128x128xbf16>, vector<256x128xf32> -> vector<256x128xf32>
    %c0_4 = arith.constant 0 : index
    %c0_5 = arith.constant 0 : index
    %4 = vector.load %arg5[%c0_4, %c0_5] : memref<1x128xf32, #tpu.memory_space<vmem>>, vector<1x128xf32>
    %5 = vector.broadcast %4 : vector<1x128xf32> to vector<256x128xf32>
    %6 = arith.addf %3, %5 : vector<256x128xf32>
    %cst_6 = arith.constant 0.000000e+00 : f32
    %7 = vector.broadcast %cst_6 : f32 to vector<256x128xf32>
    %8 = arith.maximumf %6, %7 : vector<256x128xf32>
    %c0_7 = arith.constant 0 : index
    %c0_8 = arith.constant 0 : index
    %c0_9 = arith.constant 0 : index
    %9 = vector.load %arg6[%c0_7, %c0_8, %c0_9] : memref<1x256x128xf32, #tpu.memory_space<vmem>>, vector<1x256x128xf32>
    %10 = vector.shape_cast %9 : vector<1x256x128xf32> to vector<256x128xf32>
    %11 = vector.shape_cast %8 : vector<256x128xf32> to vector<1x256x128xf32>
    tpu.vector_store %arg6[%c0_7, %c0_8, %c0_9], %11 {strides = array<i32>} : memref<1x256x128xf32, #tpu.memory_space<vmem>>, vector<1x256x128xf32>,
    return
  }
  func.func @transform_0(%arg0: i32, %arg1: i32, %arg2: i32) -> (i32, i32, i32) {
    %c0_i32 = arith.constant 0 : i32
    %c0_i32_0 = arith.constant 0 : i32
    return %arg0, %arg2, %c0_i32 : i32, i32, i32
  }
  func.func @transform_1(%arg0: i32, %arg1: i32, %arg2: i32) -> (i32, i32) {
    %c0_i32 = arith.constant 0 : i32
    %c0_i32_0 = arith.constant 0 : i32
    return %c0_i32, %arg1 : i32, i32
  }
  func.func @transform_2(%arg0: i32, %arg1: i32, %arg2: i32) -> (i32, i32) {
    %c0_i32 = arith.constant 0 : i32
    %c0_i32_0 = arith.constant 0 : i32
    return %c0_i32, %arg1 : i32, i32
  }
  func.func @transform_3(%arg0: i32, %arg1: i32, %arg2: i32) -> (i32, i32, i32) {
    %c0_i32 = arith.constant 0 : i32
    return %arg0, %arg2, %arg1 : i32, i32, i32
  }
}

</mosaic_0001>

<llo_original>
// kernel: tpu_custom_call.1
$region0: #{tpu_custom_call.1}
  #allocation0 [shape = 'u32[]', space=smem, size = 0x4, offset = 0x4, fixed_abs, tag = 'smem constant byte address 0x4 - core index']
  #allocation1 [shape = 'u32[144,128]{1,0:T(1,128)}', space=vmem, size = 0x12000, scoped, tag = 'internal scratch']
  %s0 = inlined_call_operand.hbm [shape: bf16[2,256,128], index: 0, kind: input, shape index: {}]
  %s1 = inlined_call_operand.hbm [shape: bf16[128,128], index: 1, kind: input, shape index: {}]
  %s2 = inlined_call_operand.vmem [shape: f32[1,128], index: 2, kind: input, shape index: {}]
  %s3 = inlined_call_operand.hbm [shape: f32[2,256,128], index: 3, kind: output, shape index: {}]
  %s4 = sld [smem:[#allocation0]]
  $region53: #{tpu_custom_call.1} parent=0
    _
  %s6 = ssub.s32 1, %s4
  %s7 = scalar_select 0, %s6, %s4
  $region1: #{tpu_custom_call.1} parent=0
    #allocation2 [shape = 'u8[131072]{0}', space=vmem, size = 0x20000, scoped, tag = 'input window, operand 0']
    #allocation3 [shape = 's32[2]{0}', space=sflag, size = 0x8, scoped, tag = 'scoped memory for tpu_custom_call.1']
    #allocation4 [shape = 's32[2]{0}', space=sflag, size = 0x8, scoped, tag = 'scoped memory for tpu_custom_call.1']
    #allocation5 [shape = 'u8[32768]{0}', space=vmem, size = 0x8000, scoped, tag = 'input window, operand 1, single buffered']
    #allocation6 [shape = 's32[1]{0}', space=sflag, size = 0x4, scoped, tag = 'scoped memory for tpu_custom_call.1']
    #allocation7 [shape = 'u8[262144]{0}', space=vmem, size = 0x40000, scoped, tag = 'output window, operand 0']
    %8 = vsyncpa [#allocation3], 0
    %s9 = scalar_lea.sflag [#allocation3], 1
    %10 = vsyncpa %s9, 0
    %11 = vsyncpa [#allocation6], 0
    %12 = vsyncpa [#allocation4], 0
    %s13 = scalar_lea.sflag [#allocation4], 1
    %14 = vsyncpa %s13, 0
    loop: start=0, step=1, limit=4
    $region2: #{tpu_custom_call.1} parent=1 // loop_pre_header
      _
    $region3: #{tpu_custom_call.1} parent=1 // loop_header
      %s16 = sphi 0, %s20
      %p17 = scmp.ge.s32.totalorder %s16, 4
      %s23 = sphi 0, %s42
      %s24 = sphi 0, %s38
      %s25 = sphi 0, %s34
      %s26 = sphi 0, %s23
      %s27 = sphi 0, %s24
      %s28 = sphi 0, %s25
      %s29 = sphi 0, %s26
      %s30 = sphi 0, %s27
      %s31 = sphi 0, %s28
      %s47 = sphi 0, %s49
      %s50 = sphi 0, %s47
      %s51 = sphi 0, %s50
      %s67 = sphi 0, %s51
      %s73 = sphi 0, %s75
      %s76 = sphi 0, %s73
      %s77 = sphi 0, %s76
      %s93 = sphi 0, %s77
      %s99 = sphi 0, %s101
      %s102 = sphi 0, %s99
      %s103 = sphi 0, %s102
      %s119 = sphi 0, %s103
      %s129 = sphi 0, %s131
      %s132 = sphi 0, %s129
      %s133 = sphi 0, %s132
      %s149 = sphi 0, %s133
    $region4: #{tpu_custom_call.1} parent=1 // loop_header_branch
      %19 = sbr.rel (%p17) target = $region8
    $region5: #{tpu_custom_call.1} parent=1 // loop_body
      %s21 = ssub.s32 %s16, 1
      %s22 = ssub.s32 %s16, 2
      %s32 = sadd.s32 1, %s25
      %p33 = scmp.ge.s32.totalorder %s32, 1
      %s34 = scalar_select %p33, 0, %s32
      %s35 = sadd.s32 1, %s24
      %s36 = scalar_select %p33, %s35, %s24
      %p37 = scmp.ge.s32.totalorder %s36, 1
      %s38 = scalar_select %p37, 0, %s36
      %s39 = sadd.s32 1, %s23
      %s40 = scalar_select %p37, %s39, %s23
      %p41 = scmp.ge.s32.totalorder %s40, 2
      %s42 = scalar_select %p41, 0, %s40
      %s43 = ssub.s32 %s23, %s42
      %s44 = ssub.s32 %s25, %s34
      %s45 = sor.u32 %s43, %s44
      %p46 = scmp.eq.s32.totalorder %s45, 0
      %s48 = sadd.s32 %s47, 1
      %s49 = scalar_select %p46, %s47, %s48
      %p52 = pneg %p46
      %p53 = scmp.eq.s32.totalorder %s16, 1
      %p54 = por %p52, %p53
      %p55 = scmp.ne.s32.totalorder %s47, %s50
      %p56 = scmp.eq.s32.totalorder %s16, 0
      %p57 = por %p55, %p56
      %p58 = scmp.ne.s32.totalorder %s47, %s50
      %p59 = scmp.eq.s32.totalorder %s21, 1
      %p60 = por %p58, %p59
      %p61 = scmp.ne.s32.totalorder %s50, %s51
      %p62 = scmp.eq.s32.totalorder %s21, 0
      %p63 = por %p61, %p62
      %p64 = scmp.ne.s32.totalorder %s50, %s51
      %p65 = scmp.eq.s32.totalorder %s22, 1
      %p66 = por %p64, %p65
      %p68 = scmp.ne.s32.totalorder %s51, %s67
      %p69 = scmp.eq.s32.totalorder %s22, 0
      %p70 = por %p68, %p69
      %s71 = ssub.s32 %s24, %s38
      %p72 = scmp.eq.s32.totalorder %s71, 0
      %s74 = sadd.s32 %s73, 1
      %s75 = scalar_select %p72, %s73, %s74
      %p78 = pneg %p72
      %p79 = scmp.eq.s32.totalorder %s16, 1
      %p80 = por %p78, %p79
      %p81 = scmp.ne.s32.totalorder %s73, %s76
      %p82 = scmp.eq.s32.totalorder %s16, 0
      %p83 = por %p81, %p82
      %p84 = scmp.ne.s32.totalorder %s73, %s76
      %p85 = scmp.eq.s32.totalorder %s21, 1
      %p86 = por %p84, %p85
      %p87 = scmp.ne.s32.totalorder %s76, %s77
      %p88 = scmp.eq.s32.totalorder %s21, 0
      %p89 = por %p87, %p88
      %p90 = scmp.ne.s32.totalorder %s76, %s77
      %p91 = scmp.eq.s32.totalorder %s22, 1
      %p92 = por %p90, %p91
      %p94 = scmp.ne.s32.totalorder %s77, %s93
      %p95 = scmp.eq.s32.totalorder %s22, 0
      %p96 = por %p94, %p95
      %s97 = ssub.s32 %s24, %s38
      %p98 = scmp.eq.s32.totalorder %s97, 0
      %s100 = sadd.s32 %s99, 1
      %s101 = scalar_select %p98, %s99, %s100
      %p104 = pneg %p98
      %p105 = scmp.eq.s32.totalorder %s16, 1
      %p106 = por %p104, %p105
      %p107 = scmp.ne.s32.totalorder %s99, %s102
      %p108 = scmp.eq.s32.totalorder %s16, 0
      %p109 = por %p107, %p108
      %p110 = scmp.ne.s32.totalorder %s99, %s102
      %p111 = scmp.eq.s32.totalorder %s21, 1
      %p112 = por %p110, %p111
      %p113 = scmp.ne.s32.totalorder %s102, %s103
      %p114 = scmp.eq.s32.totalorder %s21, 0
      %p115 = por %p113, %p114
      %p116 = scmp.ne.s32.totalorder %s102, %s103
      %p117 = scmp.eq.s32.totalorder %s22, 1
      %p118 = por %p116, %p117
      %p120 = scmp.ne.s32.totalorder %s103, %s119
      %p121 = scmp.eq.s32.totalorder %s22, 0
      %p122 = por %p120, %p121
      %s123 = ssub.s32 %s23, %s42
      %s124 = ssub.s32 %s25, %s34
      %s125 = sor.u32 %s123, %s124
      %s126 = ssub.s32 %s24, %s38
      %s127 = sor.u32 %s125, %s126
      %p128 = scmp.eq.s32.totalorder %s127, 0
      %s130 = sadd.s32 %s129, 1
      %s131 = scalar_select %p128, %s129, %s130
      %p134 = pneg %p128
      %p135 = scmp.eq.s32.totalorder %s16, 1
      %p136 = por %p134, %p135
      %p137 = scmp.ne.s32.totalorder %s129, %s132
      %p138 = scmp.eq.s32.totalorder %s16, 0
      %p139 = por %p137, %p138
      %p140 = scmp.ne.s32.totalorder %s129, %s132
      %p141 = scmp.eq.s32.totalorder %s21, 1
      %p142 = por %p140, %p141
      %p143 = scmp.ne.s32.totalorder %s132, %s133
      %p144 = scmp.eq.s32.totalorder %s21, 0
      %p145 = por %p143, %p144
      %p146 = scmp.ne.s32.totalorder %s132, %s133
      %p147 = scmp.eq.s32.totalorder %s22, 1
      %p148 = por %p146, %p147
      %p150 = scmp.ne.s32.totalorder %s133, %s149
      %p151 = scmp.eq.s32.totalorder %s22, 0
      %p152 = por %p150, %p151
      %p153 = scmp.le.s32.totalorder 1, %s16
      %p154 = scmp.lt.s32.totalorder %s16, 3
      %p155 = pnand %p153, %p154
      %p156 = pneg %p155
      // Predicated region
      $region9: #{tpu_custom_call.1} parent=5 // pred_check
        _
      $region10: #{tpu_custom_call.1} parent=5 // pred_check_branch
        %158 = sbr.rel (%p155) target = $region12
      $region11: #{tpu_custom_call.1} parent=5 // pred_region
        %s159 = ssub.s32 %s16, 1
        // Predicated region
        $region13: #{tpu_custom_call.1} parent=11 // pred_check
          %p160 = pneg %p89
        $region14: #{tpu_custom_call.1} parent=11 // pred_check_branch
          %162 = sbr.rel (%p160) target = $region16
        $region15: #{tpu_custom_call.1} parent=11 // pred_region
          %s164 = ssub.s32 1024, 1024
          %165 = vsyncadd [#allocation6], %s164
          %s166 = smul.addr %s27, 64
          %s167 = scalar_lea.hbm %s1, %s166
          %s168 = sshll.u32 [#allocation5], 4
          %s169 = int_to_ptr.vmem [resolvable:$true] %s168
          %174 = dma.hbm_to_vmem [thread:$0]  %s167, 1024, %s169, [#allocation6], 64, 64, 4
        $region16: #{tpu_custom_call.1} parent=11 // pred_fallthru
          _
        // Predicated region
        $region17: #{tpu_custom_call.1} parent=11 // pred_check
          %p175 = pneg %p115
        $region18: #{tpu_custom_call.1} parent=11 // pred_check_branch
          %177 = sbr.rel (%p175) target = $region20
        $region19: #{tpu_custom_call.1} parent=11 // pred_region
          %p178 = scmp.lt.s32.totalorder %s27, 0
          %s179 = scalar_select %p178, %s27, 0
          %s180 = scalar_lea.vmem %s2, %s179
        $region20: #{tpu_custom_call.1} parent=11 // pred_fallthru
          _
      $region12: #{tpu_custom_call.1} parent=5 // pred_fallthru
        _
      %p181 = scmp.lt.s32.totalorder %s16, 2
      // Predicated region
      $region21: #{tpu_custom_call.1} parent=5 // pred_check
        %p182 = pneg %p181
      $region22: #{tpu_custom_call.1} parent=5 // pred_check_branch
        %184 = sbr.rel (%p182) target = $region24
      $region23: #{tpu_custom_call.1} parent=5 // pred_region
        // Predicated region
        $region25: #{tpu_custom_call.1} parent=23 // pred_check
          %p185 = pneg %p57
        $region26: #{tpu_custom_call.1} parent=23 // pred_check_branch
          %187 = sbr.rel (%p185) target = $region28
        $region27: #{tpu_custom_call.1} parent=23 // pred_region
          %s188 = sand.u32 %s47, 1
          %s189 = scalar_lea.sflag [#allocation3], %s188
          %s190 = sand.u32 %s47, 1
          %s191 = smul.addr %s190, 128
          %s192 = scalar_lea.vmem [#allocation2], %s191
          %s193 = smul.u32 32, %s25
          %s195 = ssub.s32 2048, 2048
          %196 = vsyncadd %s189, %s195
          %s197 = smul.addr %s23, 32
          %s198 = sadd.s32 %s193, %s197
          %s199 = smul.addr %s198, 64
          %s200 = scalar_lea.hbm %s0, %s199
          %s201 = sshll.u32 %s192, 4
          %s202 = int_to_ptr.vmem [resolvable:$true] %s201
          %207 = dma.hbm_to_vmem [thread:$0]  %s200, 2048, %s202, %s189, 64, 64, 4
        $region28: #{tpu_custom_call.1} parent=23 // pred_fallthru
          _
      $region24: #{tpu_custom_call.1} parent=5 // pred_fallthru
        _
      %p208 = scmp.le.s32.totalorder 1, %s16
      %p209 = scmp.lt.s32.totalorder %s16, 3
      %p210 = pnand %p208, %p209
      %p211 = pneg %p210
      // Predicated region
      $region29: #{tpu_custom_call.1} parent=5 // pred_check
        _
      $region30: #{tpu_custom_call.1} parent=5 // pred_check_branch
        %213 = sbr.rel (%p210) target = $region32
      $region31: #{tpu_custom_call.1} parent=5 // pred_region
        %s214 = ssub.s32 %s16, 1
        %s215 = sand.u32 %s50, 1
        %s216 = scalar_lea.sflag [#allocation3], %s215
        %s217 = sand.u32 %s50, 1
        %s218 = smul.addr %s217, 128
        %s219 = scalar_lea.vmem [#allocation2], %s218
        // Predicated region
        $region33: #{tpu_custom_call.1} parent=31 // pred_check
          %p220 = pneg %p63
        $region34: #{tpu_custom_call.1} parent=31 // pred_check_branch
          %222 = sbr.rel (%p220) target = $region36
        $region35: #{tpu_custom_call.1} parent=31 // pred_region
          %223 = dma.done %s216, 2048
        $region36: #{tpu_custom_call.1} parent=31 // pred_fallthru
          _
        // Predicated region
        $region37: #{tpu_custom_call.1} parent=31 // pred_check
          %p224 = pneg %p89
        $region38: #{tpu_custom_call.1} parent=31 // pred_check_branch
          %226 = sbr.rel (%p224) target = $region40
        $region39: #{tpu_custom_call.1} parent=31 // pred_region
          %227 = dma.done [#allocation6], 1024
        $region40: #{tpu_custom_call.1} parent=31 // pred_fallthru
          _
        %s228 = sand.u32 %s50, 1
        %s229 = scalar_lea.sflag [#allocation3], %s228
        %s230 = sand.u32 %s50, 1
        %s231 = smul.addr %s230, 128
        %s232 = scalar_lea.vmem [#allocation2], %s231
        %p233 = pneg %p63
        %p234 = pneg %p60
        %p235 = pneg %p89
        %p236 = pneg %p86
        %p237 = scmp.lt.s32.totalorder %s27, 0
        %s238 = scalar_select %p237, %s27, 0
        %s239 = scalar_lea.vmem %s2, %s238
        %p240 = pneg %p115
        %p241 = pneg %p112
        %p242 = pneg %p145
        %p243 = pneg %p142
        %s244 = sand.u32 %s132, 1
        %s245 = scalar_lea.sflag [#allocation4], %s244
        %s246 = sand.u32 %s132, 1
        %s247 = smul.addr %s246, 256
        %s248 = scalar_lea.vmem [#allocation7], %s247
        %s249 = smul.u32 32, %s28
        %p250 = scmp.lt.s32.totalorder %s27, 0
        %s251 = scalar_select %p250, %s27, 0
        %s252 = scalar_lea.vmem %s2, %s251
        %s253 = smul.u32 32, %s28
        %v255 = vld [vmem:[%s219] sm:$0xf]
        %v256 = vld [vmem:[%s219 + $0x4] sm:$0xf]
        %v257 = vld [vmem:[%s219 + $0x8] sm:$0xf]
        %v258 = vld [vmem:[%s219 + $0xc] sm:$0xf]
        %v259 = vld [vmem:[%s219 + $0x10] sm:$0xf]
        %v260 = vld [vmem:[%s219 + $0x14] sm:$0xf]
        %v261 = vld [vmem:[%s219 + $0x18] sm:$0xf]
        %v262 = vld [vmem:[%s219 + $0x1c] sm:$0xf]
        %v263 = vld [vmem:[%s219 + $0x20] sm:$0xf]
        %v264 = vld [vmem:[%s219 + $0x24] sm:$0xf]
        %v265 = vld [vmem:[%s219 + $0x28] sm:$0xf]
        %v266 = vld [vmem:[%s219 + $0x2c] sm:$0xf]
        %v267 = vld [vmem:[%s219 + $0x30] sm:$0xf]
        %v268 = vld [vmem:[%s219 + $0x34] sm:$0xf]
        %v269 = vld [vmem:[%s219 + $0x38] sm:$0xf]
        %v270 = vld [vmem:[%s219 + $0x3c] sm:$0xf]
        %v271 = vld [vmem:[%s219 + $0x40] sm:$0xf]
        %v272 = vld [vmem:[%s219 + $0x44] sm:$0xf]
        %v273 = vld [vmem:[%s219 + $0x48] sm:$0xf]
        %v274 = vld [vmem:[%s219 + $0x4c] sm:$0xf]
        %v275 = vld [vmem:[%s219 + $0x50] sm:$0xf]
        %v276 = vld [vmem:[%s219 + $0x54] sm:$0xf]
        %v277 = vld [vmem:[%s219 + $0x58] sm:$0xf]
        %v278 = vld [vmem:[%s219 + $0x5c] sm:$0xf]
        %v279 = vld [vmem:[%s219 + $0x60] sm:$0xf]
        %v280 = vld [vmem:[%s219 + $0x64] sm:$0xf]
        %v281 = vld [vmem:[%s219 + $0x68] sm:$0xf]
        %v282 = vld [vmem:[%s219 + $0x6c] sm:$0xf]
        %v283 = vld [vmem:[%s219 + $0x70] sm:$0xf]
        %v284 = vld [vmem:[%s219 + $0x74] sm:$0xf]
        %v285 = vld [vmem:[%s219 + $0x78] sm:$0xf]
        %v286 = vld [vmem:[%s219 + $0x7c] sm:$0xf]
        %v287 = vld [vmem:[#allocation5] sm:$0xf]
        %v288 = vld [vmem:[#allocation5 + $0x4] sm:$0xf]
        %v289 = vld [vmem:[#allocation5 + $0x8] sm:$0xf]
        %v290 = vld [vmem:[#allocation5 + $0xc] sm:$0xf]
        %v291 = vld [vmem:[#allocation5 + $0x10] sm:$0xf]
        %v292 = vld [vmem:[#allocation5 + $0x14] sm:$0xf]
        %v293 = vld [vmem:[#allocation5 + $0x18] sm:$0xf]
        %v294 = vld [vmem:[#allocation5 + $0x1c] sm:$0xf]
        %v295 = vld [vmem:[#allocation5 + $0x20] sm:$0xf]
        %v296 = vld [vmem:[#allocation5 + $0x24] sm:$0xf]
        %v297 = vld [vmem:[#allocation5 + $0x28] sm:$0xf]
        %v298 = vld [vmem:[#allocation5 + $0x2c] sm:$0xf]
        %v299 = vld [vmem:[#allocation5 + $0x30] sm:$0xf]
        %v300 = vld [vmem:[#allocation5 + $0x34] sm:$0xf]
        %v301 = vld [vmem:[#allocation5 + $0x38] sm:$0xf]
        %v302 = vld [vmem:[#allocation5 + $0x3c] sm:$0xf]
        %v303 = vld [vmem:[%s252] sm:$0x1]
        %v305 = vlaneseq
        %v306 = vshrl.u32 %v305, 7
        %v307 = vsub.s32 0, %v306
        %v308 = vrot.slane %v303, %v307
        %v342 = vunpack.c.l.b16 %v255
        %v343 = vunpack.c.l.b16 %v256
        %v344 = vunpack.c.l.b16 %v257
        %v345 = vunpack.c.l.b16 %v258
        %v346 = vunpack.c.l.b16 %v259
        %v347 = vunpack.c.l.b16 %v260
        %v348 = vunpack.c.l.b16 %v261
        %v349 = vunpack.c.l.b16 %v262
        %v350 = vunpack.c.l.b16 %v263
        %v351 = vunpack.c.l.b16 %v264
        %v352 = vunpack.c.l.b16 %v265
        %v353 = vunpack.c.l.b16 %v266
        %v354 = vunpack.c.l.b16 %v267
        %v355 = vunpack.c.l.b16 %v268
        %v356 = vunpack.c.l.b16 %v269
        %v357 = vunpack.c.l.b16 %v270
        %v358 = vunpack.c.l.b16 %v271
        %v359 = vunpack.c.l.b16 %v272
        %v360 = vunpack.c.l.b16 %v273
        %v361 = vunpack.c.l.b16 %v274
        %v362 = vunpack.c.l.b16 %v275
        %v363 = vunpack.c.l.b16 %v276
        %v364 = vunpack.c.l.b16 %v277
        %v365 = vunpack.c.l.b16 %v278
        %v366 = vunpack.c.l.b16 %v279
        %v367 = vunpack.c.l.b16 %v280
        %v368 = vunpack.c.l.b16 %v281
        %v369 = vunpack.c.l.b16 %v282
        %v370 = vunpack.c.l.b16 %v283
        %v371 = vunpack.c.l.b16 %v284
        %v372 = vunpack.c.l.b16 %v285
        %v373 = vunpack.c.l.b16 %v286
        %v374 = vpack.c.b16 %v343, %v342
        %v375 = vpack.c.b16 %v345, %v344
        %v376 = vpack.c.b16 %v347, %v346
        %v377 = vpack.c.b16 %v349, %v348
        %v378 = vpack.c.b16 %v351, %v350
        %v379 = vpack.c.b16 %v353, %v352
        %v380 = vpack.c.b16 %v355, %v354
        %v381 = vpack.c.b16 %v357, %v356
        %v382 = vpack.c.b16 %v359, %v358
        %v383 = vpack.c.b16 %v361, %v360
        %v384 = vpack.c.b16 %v363, %v362
        %v385 = vpack.c.b16 %v365, %v364
        %v386 = vpack.c.b16 %v367, %v366
        %v387 = vpack.c.b16 %v369, %v368
        %v388 = vpack.c.b16 %v371, %v370
        %v389 = vpack.c.b16 %v373, %v372
        %v422 = vunpack.c.l.b16 %v287
        %v423 = vunpack.c.l.b16 %v288
        %v424 = vunpack.c.l.b16 %v289
        %v425 = vunpack.c.l.b16 %v290
        %v426 = vunpack.c.l.b16 %v291
        %v427 = vunpack.c.l.b16 %v292
        %v428 = vunpack.c.l.b16 %v293
        %v429 = vunpack.c.l.b16 %v294
        %v430 = vunpack.c.l.b16 %v295
        %v431 = vunpack.c.l.b16 %v296
        %v432 = vunpack.c.l.b16 %v297
        %v433 = vunpack.c.l.b16 %v298
        %v434 = vunpack.c.l.b16 %v299
        %v435 = vunpack.c.l.b16 %v300
        %v436 = vunpack.c.l.b16 %v301
        %v437 = vunpack.c.l.b16 %v302
        %v438 = vpack.c.b16 %v423, %v422
        %v439 = vpack.c.b16 %v425, %v424
        %v440 = vpack.c.b16 %v427, %v426
        %v441 = vpack.c.b16 %v429, %v428
        %v442 = vpack.c.b16 %v431, %v430
        %v443 = vpack.c.b16 %v433, %v432
        %v444 = vpack.c.b16 %v435, %v434
        %v445 = vpack.c.b16 %v437, %v436
        %454 = vmatprep.subr.bf16.mxu0 0
        %455 = vmatpush1.bf16.msra.mxu0 %v438
        %456 = vmatprep.subr.bf16.mxu0 0
        %457 = vmatpush1.bf16.msra.mxu0 %v439
        %458 = vmatprep.subr.bf16.mxu0 0
        %459 = vmatpush1.bf16.msra.mxu0 %v440
        %460 = vmatprep.subr.bf16.mxu0 0
        %461 = vmatpush1.bf16.msra.mxu0 %v441
        %462 = vmatprep.subr.bf16.mxu0 0
        %463 = vmatpush1.bf16.msra.mxu0 %v442
        %464 = vmatprep.subr.bf16.mxu0 0
        %465 = vmatpush1.bf16.msra.mxu0 %v443
        %466 = vmatprep.subr.bf16.mxu0 0
        %467 = vmatpush1.bf16.msra.mxu0 %v444
        %468 = vmatprep.subr.bf16.mxu0 0
        %469 = vmatpush1.bf16.msra.mxu0 %v445
        %470 = vmatprep.subr.bf16.mxu0 0
        %471 = vmatpush1.bf16.msra.mxu0 0
        %472 = vmatprep.subr.bf16.mxu0 0
        %473 = vmatpush1.bf16.msra.mxu0 0
        %474 = vmatprep.subr.bf16.mxu0 0
        %475 = vmatpush1.bf16.msra.mxu0 0
        %476 = vmatprep.subr.bf16.mxu0 0
        %477 = vmatpush1.bf16.msra.mxu0 0
        %478 = vmatprep.subr.bf16.mxu0 0
        %479 = vmatpush1.bf16.msra.mxu0 0
        %480 = vmatprep.subr.bf16.mxu0 0
        %481 = vmatpush1.bf16.msra.mxu0 0
        %482 = vmatprep.subr.bf16.mxu0 0
        %483 = vmatpush1.bf16.msra.mxu0 0
        %484 = vmatprep.subr.bf16.mxu0 0
        %485 = vmatpush1.bf16.msra.mxu0 0
        %486 = vmatprep.mubr.bf16.mxu0 0
        %487 = vmatmul.mubr.bf16.gmra.mrb[0].mxu0 %v374
        %v488 = vpop.f32.mrb[0].mxu0
        %v489 = vadd.f32 %v308, %v488
        %v490 = vpop.f32.mrb[0].mxu0
        %v491 = vpop.f32.mrb[0].mxu0
        %v492 = vadd.f32 %v308, %v491
        %v493 = vpop.f32.mrb[0].mxu0
        %494 = vmatprep.mubr.bf16.mxu0 0
        %495 = vmatmul.mubr.bf16.gmra.mrb[0].mxu0 %v375
        %v496 = vpop.f32.mrb[0].mxu0
        %v497 = vadd.f32 %v308, %v496
        %v498 = vpop.f32.mrb[0].mxu0
        %v499 = vpop.f32.mrb[0].mxu0
        %v500 = vadd.f32 %v308, %v499
        %v501 = vpop.f32.mrb[0].mxu0
        %502 = vmatprep.mubr.bf16.mxu0 0
        %503 = vmatmul.mubr.bf16.gmra.mrb[0].mxu0 %v376
        %v504 = vpop.f32.mrb[0].mxu0
        %v505 = vadd.f32 %v308, %v504
        %v506 = vpop.f32.mrb[0].mxu0
        %v507 = vpop.f32.mrb[0].mxu0
        %v508 = vadd.f32 %v308, %v507
        %v509 = vpop.f32.mrb[0].mxu0
        %510 = vmatprep.mubr.bf16.mxu0 0
        %511 = vmatmul.mubr.bf16.gmra.mrb[0].mxu0 %v377
        %v512 = vpop.f32.mrb[0].mxu0
        %v513 = vadd.f32 %v308, %v512
        %v514 = vpop.f32.mrb[0].mxu0
        %v515 = vpop.f32.mrb[0].mxu0
        %v516 = vadd.f32 %v308, %v515
        %v517 = vpop.f32.mrb[0].mxu0
        %518 = vmatprep.mubr.bf16.mxu0 0
        %519 = vmatmul.mubr.bf16.gmra.mrb[0].mxu0 %v378
        %v520 = vpop.f32.mrb[0].mxu0
        %v521 = vadd.f32 %v308, %v520
        %v522 = vpop.f32.mrb[0].mxu0
        %v523 = vpop.f32.mrb[0].mxu0
        %v524 = vadd.f32 %v308, %v523
        %v525 = vpop.f32.mrb[0].mxu0
        %526 = vmatprep.mubr.bf16.mxu0 0
        %527 = vmatmul.mubr.bf16.gmra.mrb[0].mxu0 %v379
        %v528 = vpop.f32.mrb[0].mxu0
        %v529 = vadd.f32 %v308, %v528
        %v530 = vpop.f32.mrb[0].mxu0
        %v531 = vpop.f32.mrb[0].mxu0
        %v532 = vadd.f32 %v308, %v531
        %v533 = vpop.f32.mrb[0].mxu0
        %534 = vmatprep.mubr.bf16.mxu0 0
        %535 = vmatmul.mubr.bf16.gmra.mrb[0].mxu0 %v380
        %v536 = vpop.f32.mrb[0].mxu0
        %v537 = vadd.f32 %v308, %v536
        %v538 = vpop.f32.mrb[0].mxu0
        %v539 = vpop.f32.mrb[0].mxu0
        %v540 = vadd.f32 %v308, %v539
        %v541 = vpop.f32.mrb[0].mxu0
        %542 = vmatprep.mubr.bf16.mxu0 0
        %543 = vmatmul.mubr.bf16.gmra.mrb[0].mxu0 %v381
        %v544 = vpop.f32.mrb[0].mxu0
        %v545 = vadd.f32 %v308, %v544
        %v546 = vpop.f32.mrb[0].mxu0
        %v547 = vpop.f32.mrb[0].mxu0
        %v548 = vadd.f32 %v308, %v547
        %v549 = vpop.f32.mrb[0].mxu0
        %550 = vmatprep.mubr.bf16.mxu0 0
        %551 = vmatmul.mubr.bf16.gmra.mrb[0].mxu0 %v382
        %v552 = vpop.f32.mrb[0].mxu0
        %v553 = vadd.f32 %v308, %v552
        %v554 = vpop.f32.mrb[0].mxu0
        %v555 = vpop.f32.mrb[0].mxu0
        %v556 = vadd.f32 %v308, %v555
        %v557 = vpop.f32.mrb[0].mxu0
        %558 = vmatprep.mubr.bf16.mxu0 0
        %559 = vmatmul.mubr.bf16.gmra.mrb[0].mxu0 %v383
        %v560 = vpop.f32.mrb[0].mxu0
        %v561 = vadd.f32 %v308, %v560
        %v562 = vpop.f32.mrb[0].mxu0
        %v563 = vpop.f32.mrb[0].mxu0
        %v564 = vadd.f32 %v308, %v563
        %v565 = vpop.f32.mrb[0].mxu0
        %566 = vmatprep.mubr.bf16.mxu0 0
        %567 = vmatmul.mubr.bf16.gmra.mrb[0].mxu0 %v384
        %v568 = vpop.f32.mrb[0].mxu0
        %v569 = vadd.f32 %v308, %v568
        %v570 = vpop.f32.mrb[0].mxu0
        %v571 = vpop.f32.mrb[0].mxu0
        %v572 = vadd.f32 %v308, %v571
        %v573 = vpop.f32.mrb[0].mxu0
        %574 = vmatprep.mubr.bf16.mxu0 0
        %575 = vmatmul.mubr.bf16.gmra.mrb[0].mxu0 %v385
        %v576 = vpop.f32.mrb[0].mxu0
        %v577 = vadd.f32 %v308, %v576
        %v578 = vpop.f32.mrb[0].mxu0
        %v579 = vpop.f32.mrb[0].mxu0
        %v580 = vadd.f32 %v308, %v579
        %v581 = vpop.f32.mrb[0].mxu0
        %582 = vmatprep.mubr.bf16.mxu0 0
        %583 = vmatmul.mubr.bf16.gmra.mrb[0].mxu0 %v386
        %v584 = vpop.f32.mrb[0].mxu0
        %v585 = vadd.f32 %v308, %v584
        %v586 = vpop.f32.mrb[0].mxu0
        %v587 = vpop.f32.mrb[0].mxu0
        %v588 = vadd.f32 %v308, %v587
        %v589 = vpop.f32.mrb[0].mxu0
        %590 = vmatprep.mubr.bf16.mxu0 0
        %591 = vmatmul.mubr.bf16.gmra.mrb[0].mxu0 %v387
        %v592 = vpop.f32.mrb[0].mxu0
        %v593 = vadd.f32 %v308, %v592
        %v594 = vpop.f32.mrb[0].mxu0
        %v595 = vpop.f32.mrb[0].mxu0
        %v596 = vadd.f32 %v308, %v595
        %v597 = vpop.f32.mrb[0].mxu0
        %598 = vmatprep.mubr.bf16.mxu0 0
        %599 = vmatmul.mubr.bf16.gmra.mrb[0].mxu0 %v388
        %v600 = vpop.f32.mrb[0].mxu0
        %v601 = vadd.f32 %v308, %v600
        %v602 = vpop.f32.mrb[0].mxu0
        %v603 = vpop.f32.mrb[0].mxu0
        %v604 = vadd.f32 %v308, %v603
        %v605 = vpop.f32.mrb[0].mxu0
        %606 = vmatprep.mubr.bf16.mxu0 0
        %607 = vmatmul.mubr.bf16.gmra.mrb[0].mxu0 %v389
        %v608 = vpop.f32.mrb[0].mxu0
        %v609 = vadd.f32 %v308, %v608
        %v610 = vpop.f32.mrb[0].mxu0
        %v611 = vpop.f32.mrb[0].mxu0
        %v612 = vadd.f32 %v308, %v611
        %v613 = vpop.f32.mrb[0].mxu0
        %614 = vdwg.mxu0
        %v615 = vmax.f32 %v489, 0.0
        %v616 = vmax.f32 %v492, 0.0
        %v617 = vmax.f32 %v497, 0.0
        %v618 = vmax.f32 %v500, 0.0
        %v619 = vmax.f32 %v505, 0.0
        %v620 = vmax.f32 %v508, 0.0
        %v621 = vmax.f32 %v513, 0.0
        %v622 = vmax.f32 %v516, 0.0
        %v623 = vmax.f32 %v521, 0.0
        %v624 = vmax.f32 %v524, 0.0
        %v625 = vmax.f32 %v529, 0.0
        %v626 = vmax.f32 %v532, 0.0
        %v627 = vmax.f32 %v537, 0.0
        %v628 = vmax.f32 %v540, 0.0
        %v629 = vmax.f32 %v545, 0.0
        %v630 = vmax.f32 %v548, 0.0
        %v631 = vmax.f32 %v553, 0.0
        %v632 = vmax.f32 %v556, 0.0
        %v633 = vmax.f32 %v561, 0.0
        %v634 = vmax.f32 %v564, 0.0
        %v635 = vmax.f32 %v569, 0.0
        %v636 = vmax.f32 %v572, 0.0
        %v637 = vmax.f32 %v577, 0.0
        %v638 = vmax.f32 %v580, 0.0
        %v639 = vmax.f32 %v585, 0.0
        %v640 = vmax.f32 %v588, 0.0
        %v641 = vmax.f32 %v593, 0.0
        %v642 = vmax.f32 %v596, 0.0
        %v643 = vmax.f32 %v601, 0.0
        %v644 = vmax.f32 %v604, 0.0
        %v645 = vmax.f32 %v609, 0.0
        %v646 = vmax.f32 %v612, 0.0
        %647 = vst [vmem:[%s248] sm:$0xff] %v615
        %648 = vst [vmem:[%s248 + $0x8] sm:$0xff] %v616
        %649 = vst [vmem:[%s248 + $0x10] sm:$0xff] %v617
        %650 = vst [vmem:[%s248 + $0x18] sm:$0xff] %v618
        %651 = vst [vmem:[%s248 + $0x20] sm:$0xff] %v619
        %652 = vst [vmem:[%s248 + $0x28] sm:$0xff] %v620
        %653 = vst [vmem:[%s248 + $0x30] sm:$0xff] %v621
        %654 = vst [vmem:[%s248 + $0x38] sm:$0xff] %v622
        %655 = vst [vmem:[%s248 + $0x40] sm:$0xff] %v623
        %656 = vst [vmem:[%s248 + $0x48] sm:$0xff] %v624
        %657 = vst [vmem:[%s248 + $0x50] sm:$0xff] %v625
        %658 = vst [vmem:[%s248 + $0x58] sm:$0xff] %v626
        %659 = vst [vmem:[%s248 + $0x60] sm:$0xff] %v627
        %660 = vst [vmem:[%s248 + $0x68] sm:$0xff] %v628
        %661 = vst [vmem:[%s248 + $0x70] sm:$0xff] %v629
        %662 = vst [vmem:[%s248 + $0x78] sm:$0xff] %v630
        %663 = vst [vmem:[%s248 + $0x80] sm:$0xff] %v631
        %664 = vst [vmem:[%s248 + $0x88] sm:$0xff] %v632
        %665 = vst [vmem:[%s248 + $0x90] sm:$0xff] %v633
        %666 = vst [vmem:[%s248 + $0x98] sm:$0xff] %v634
        %667 = vst [vmem:[%s248 + $0xa0] sm:$0xff] %v635
        %668 = vst [vmem:[%s248 + $0xa8] sm:$0xff] %v636
        %669 = vst [vmem:[%s248 + $0xb0] sm:$0xff] %v637
        %670 = vst [vmem:[%s248 + $0xb8] sm:$0xff] %v638
        %671 = vst [vmem:[%s248 + $0xc0] sm:$0xff] %v639
        %672 = vst [vmem:[%s248 + $0xc8] sm:$0xff] %v640
        %673 = vst [vmem:[%s248 + $0xd0] sm:$0xff] %v641
        %674 = vst [vmem:[%s248 + $0xd8] sm:$0xff] %v642
        %675 = vst [vmem:[%s248 + $0xe0] sm:$0xff] %v643
        %676 = vst [vmem:[%s248 + $0xe8] sm:$0xff] %v644
        %677 = vst [vmem:[%s248 + $0xf0] sm:$0xff] %v645
        %678 = vst [vmem:[%s248 + $0xf8] sm:$0xff] %v646
        %s679 = sand.u32 %s132, 1
        %s680 = scalar_lea.sflag [#allocation4], %s679
        %s681 = sand.u32 %s132, 1
        %s682 = smul.addr %s681, 256
        %s683 = scalar_lea.vmem [#allocation7], %s682
        // Predicated region
        $region41: #{tpu_custom_call.1} parent=31 // pred_check
          %p684 = pneg %p142
        $region42: #{tpu_custom_call.1} parent=31 // pred_check_branch
          %686 = sbr.rel (%p684) target = $region44
        $region43: #{tpu_custom_call.1} parent=31 // pred_region
          %s687 = smul.u32 32, %s28
          %s689 = ssub.s32 4096, 4096
          %690 = vsyncadd %s680, %s689
          %s691 = sadd.s32 %s27, %s687
          %s692 = smul.addr %s26, 32
          %s693 = sadd.s32 %s691, %s692
          %s694 = smul.addr %s693, 128
          %s695 = scalar_lea.hbm %s3, %s694
          %s696 = sshll.u32 %s683, 4
          %s697 = int_to_ptr.vmem [resolvable:$true] %s696
          %702 = dma.vmem_to_hbm [thread:$0]  %s697, 4096, %s695, %s680, 128, 128, 8
        $region44: #{tpu_custom_call.1} parent=31 // pred_fallthru
          _
      $region32: #{tpu_custom_call.1} parent=5 // pred_fallthru
        _
      %p703 = scmp.le.s32.totalorder 2, %s16
      // Predicated region
      $region45: #{tpu_custom_call.1} parent=5 // pred_check
        %p704 = pneg %p703
      $region46: #{tpu_custom_call.1} parent=5 // pred_check_branch
        %706 = sbr.rel (%p704) target = $region48
      $region47: #{tpu_custom_call.1} parent=5 // pred_region
        %s707 = ssub.s32 %s16, 2
        // Predicated region
        $region49: #{tpu_custom_call.1} parent=47 // pred_check
          %p708 = pneg %p148
        $region50: #{tpu_custom_call.1} parent=47 // pred_check_branch
          %710 = sbr.rel (%p708) target = $region52
        $region51: #{tpu_custom_call.1} parent=47 // pred_region
          %s711 = sand.u32 %s133, 1
          %s712 = scalar_lea.sflag [#allocation4], %s711
          %s713 = sand.u32 %s133, 1
          %s714 = smul.addr %s713, 256
          %s715 = scalar_lea.vmem [#allocation7], %s714
          %716 = dma.done %s712, 4096
        $region52: #{tpu_custom_call.1} parent=47 // pred_fallthru
          _
      $region48: #{tpu_custom_call.1} parent=5 // pred_fallthru
        _
    $region6: #{tpu_custom_call.1} parent=1 // loop_footer
      %s20 = sadd.s32 1, %s16
    $region7: #{tpu_custom_call.1} parent=1 // loop_footer_branch
      %15 = sbr.rel target = $region3
    $region8: #{tpu_custom_call.1} parent=1 // loop_exit
      _
    %717 = vsyncpa [#allocation3], 1
    %s718 = scalar_lea.sflag [#allocation3], 1
    %719 = vsyncpa %s718, 1
    %720 = vsyncpa [#allocation6], 1
    %721 = vsyncpa [#allocation4], 1
    %s722 = scalar_lea.sflag [#allocation4], 1
    %723 = vsyncpa %s722, 1

</llo_original>
